<compile_context>
chip_gen: v7x
topology: tpu7x:2x2x1
jax: 0.10.0
libtpu: 0.0.40
codegen_flags: <defaults>
</compile_context>

<pallas_src>
import functools

import jax
import jax.numpy as jnp
from jax.experimental import pallas as pl
from jax.experimental.pallas import tpu as pltpu  # noqa: F401

HEAD_NAMES = ["humour", "sarcasm", "offensive", "motivation"]
C_SLOT = 32                         # per-head lane slot (4 * 32 = 128 lanes)
OUT_W = len(HEAD_NAMES) * C_SLOT    # 128, lane-dense output width


def _fused_kernel(fc_ref, wb_ref, o_ref, *, seq, feat):
    """Fused all-heads forward, single invocation, no grid.

    fc_ref: (S, B, F) f32         input in its native layout (no transpose)
    wb_ref: (S*F + 16, 128) bf16  rows [0, S*F): collapsed weight matrix W
                                  row  S*F    : effective bias
    o_ref : (B, 128) f32          lane-dense logits slab
                                  (head i occupies lanes [32*i, 32*i + n_i))
    """
    b = o_ref.shape[0]
    out_w = o_ref.shape[1]
    acc = jnp.zeros((b, out_w), jnp.float32)
    # x @ W  ==  sum_s fc[s] @ W[s*F:(s+1)*F, :]
    # where x = permute(1,0,2).reshape(B, S*F) of fc  (transpose folded away).
    for s in range(seq):
        acc = acc + jnp.dot(
            fc_ref[s].astype(jnp.bfloat16),
            wb_ref[pl.ds(s * feat, feat), :],
            preferred_element_type=jnp.float32,
        )
    bias = wb_ref[pl.ds(seq * feat, 1), :].astype(jnp.float32)   # (1, 128)
    o_ref[...] = acc + bias
    # drop(logits) == logits at inference


def classifier_heads_pallas(fc_input, wb):
    """One pallas_call, no grid: full arrays as VMEM blocks (2 inputs, 1 out)."""
    s, b, f = fc_input.shape
    hidden_d = s * f
    assert wb.shape[0] == hidden_d + 16, (wb.shape, hidden_d)
    out_w = wb.shape[1]

    flops = 2 * b * hidden_d * out_w + b * out_w
    bytes_accessed = 4 * fc_input.size + 2 * wb.size + 4 * b * out_w

    return pl.pallas_call(
        functools.partial(_fused_kernel, seq=s, feat=f),
        out_shape=jax.ShapeDtypeStruct((b, out_w), jnp.float32),
        cost_estimate=pl.CostEstimate(
            flops=flops, transcendentals=0, bytes_accessed=bytes_accessed),
    )(fc_input, wb)


def init_params(key, hidden_d, hidden_d2, n_classes_list):
    """Deterministic PyTorch-Linear-style init (uniform +/- 1/sqrt(fan_in))."""
    params = {}
    keys = jax.random.split(key, 4 * 4)
    k_iter = iter(keys)
    for name, n_cls in zip(HEAD_NAMES, n_classes_list):
        bnd1 = 1.0 / jnp.sqrt(hidden_d)
        w1 = jax.random.uniform(next(k_iter), (hidden_d2, hidden_d),
                                jnp.float32, -bnd1, bnd1)
        b1 = jax.random.uniform(next(k_iter), (hidden_d2,),
                                jnp.float32, -bnd1, bnd1)
        bnd2 = 1.0 / jnp.sqrt(hidden_d2)
        w2 = jax.random.uniform(next(k_iter), (n_cls, hidden_d2),
                                jnp.float32, -bnd2, bnd2)
        b2 = jax.random.uniform(next(k_iter), (n_cls,),
                                jnp.float32, -bnd2, bnd2)
        params[name] = (w1, b1, w2, b2)
    return params


def prepare_collapsed_params(params, n_classes_list, hidden_d2, c_slot=C_SLOT):
    """One-time offline parameter fusion + algebraic collapse.

    Returns a single bf16 buffer wb of shape (hidden_d + 16, 4*c_slot):
      rows [0, hidden_d) : W     = W1_fused @ W2_fused      (hidden_d, 128)
      row   hidden_d     : b_eff = b1_fused @ W2_fused + b2_fused
      rows beyond        : zero padding (bf16 sublane-tile alignment)
    """
    n_heads = len(HEAD_NAMES)
    hidden_d = params[HEAD_NAMES[0]][0].shape[1]
    out_w = n_heads * c_slot

    # (hidden_d, n_heads*hidden_d2): columns = [head0 | head1 | head2 | head3]
    w1_fused = jnp.concatenate(
        [params[n][0].T for n in HEAD_NAMES], axis=1).astype(jnp.float32)
    b1_fused = jnp.concatenate(
        [params[n][1] for n in HEAD_NAMES])[None, :].astype(jnp.float32)

    # Block-diagonal second layer: head i -> lanes [i*c_slot, i*c_slot + n_cls)
    w2_fused = jnp.zeros((n_heads * hidden_d2, out_w), jnp.float32)
    b2_fused = jnp.zeros((1, out_w), jnp.float32)
    for i, (name, n_cls) in enumerate(zip(HEAD_NAMES, n_classes_list)):
        w2_fused = w2_fused.at[
            i * hidden_d2:(i + 1) * hidden_d2,
            i * c_slot:i * c_slot + n_cls].set(
                params[name][2].T.astype(jnp.float32))
        b2_fused = b2_fused.at[
            0, i * c_slot:i * c_slot + n_cls].set(
                params[name][3].astype(jnp.float32))

    # Algebraic collapse: no nonlinearity between the two linears and eval
    # dropout is identity, so logits = x @ W + b_eff exactly (up to f32 order).
    w_collapsed = w1_fused @ w2_fused                       # (hidden_d, 128)
    b_collapsed = b1_fused @ w2_fused + b2_fused            # (1, 128)

    # Pack W and the bias into one contiguous buffer -> single DMA descriptor.
    wb = jnp.zeros((hidden_d + 16, out_w), jnp.float32)
    wb = wb.at[:hidden_d, :].set(w_collapsed)
    wb = wb.at[hidden_d, :].set(b_collapsed[0])
    return wb.astype(jnp.bfloat16)


def classifier_lstm_intensity_forward(fc_input, wb):
    """JAX forward matching the PyTorch module in eval mode.

    fc_input: (S, B, F) f32 with hidden_d == S * F (consumed in native layout).
    Returns the lane-dense (B, 128) logits slab; use split_heads() at the
    consumer (outside the jit) to get the four per-head logit arrays, so no
    tiny sub-128-lane slice ops are emitted inside the jit.
    """
    return classifier_heads_pallas(fc_input, wb)


def split_heads(slab, n_classes_list, c_slot=C_SLOT):
    """Slice the (B, 128) logits slab into the four per-head logit arrays."""
    return tuple(
        slab[:, i * c_slot:i * c_slot + n_cls]
        for i, n_cls in enumerate(n_classes_list))


def _reference_forward(fc_input, params):
    """Pure-JAX f32 reference matching the PyTorch forward (eval mode)."""
    s, b, f = fc_input.shape
    x = jnp.transpose(fc_input, (1, 0, 2)).reshape(b, s * f)
    outs = []
    for n in HEAD_NAMES:
        w1, b1, w2, b2 = params[n]
        h = x @ w1.T + b1
        outs.append(h @ w2.T + b2)
    return tuple(outs)


if __name__ == "__main__":
    # Small shapes consistent with the module: seq=8, feat=16 -> hidden_d=128.
    S, B, F = 8, 2, 16
    hidden_d = S * F          # 128
    hidden_d2 = 64
    n_classes = [4, 4, 4, 2]  # humour, sarcasm, offensive, motivation

    key = jax.random.PRNGKey(0)
    k_in, k_params = jax.random.split(key)
    fc_input = jax.random.normal(k_in, (S, B, F), dtype=jnp.float32)
    params = init_params(k_params, hidden_d, hidden_d2, n_classes)

    # One-time parameter fusion + collapse (hoisted out of the forward path).
    wb = jax.block_until_ready(
        prepare_collapsed_params(params, n_classes, hidden_d2))

    fwd = jax.jit(lambda x: classifier_lstm_intensity_forward(x, wb))
    slab = jax.block_until_ready(fwd(fc_input))
    logits = split_heads(slab, n_classes)

    ref = _reference_forward(fc_input, params)
    # bf16 weight/activation storage (f32 accumulation) bounds the logit error
    # to ~1e-3 at these magnitudes; 2e-2 tolerance is comfortably safe.
    for got, want in zip(logits, ref):
        assert got.shape == want.shape, (got.shape, want.shape)
        assert jnp.allclose(got, want, atol=2e-2, rtol=2e-2), \
            float(jnp.max(jnp.abs(got - want)))

    print("KERNEL_OK")
</pallas_src>

<mosaic_0001>
module attributes {stable_mosaic.version = 11 : i64} {
  func.func @_fused_kernel(%arg0: memref<8x2x16xf32, #tpu.memory_space<vmem>>, %arg1: memref<144x128xbf16, #tpu.memory_space<vmem>>, %arg2: memref<2x128xf32, #tpu.memory_space<vmem>>) attributes {dimension_semantics = [], scalar_prefetch = 0 : i64, scratch_operands = 0 : i64, tpu.core_type = #tpu.core_type<tc>} {
    %cst = arith.constant 0.000000e+00 : f32
    %0 = vector.broadcast %cst : f32 to vector<2x128xf32>
    %c0 = arith.constant 0 : index
    %c0_0 = arith.constant 0 : index
    %c0_1 = arith.constant 0 : index
    %1 = vector.load %arg0[%c0, %c0_0, %c0_1] : memref<8x2x16xf32, #tpu.memory_space<vmem>>, vector<1x2x16xf32>
    %2 = vector.shape_cast %1 : vector<1x2x16xf32> to vector<2x16xf32>
    %3 = arith.truncf %2 : vector<2x16xf32> to vector<2x16xbf16>
    %c0_2 = arith.constant 0 : index
    %c0_3 = arith.constant 0 : index
    %4 = vector.load %arg1[%c0_2, %c0_3] : memref<144x128xbf16, #tpu.memory_space<vmem>>, vector<16x128xbf16>
    %cst_4 = arith.constant dense<0.000000e+00> : vector<2x128xf32>
    %5 = tpu.matmul %3, %4, %cst_4 {dimension_numbers = #tpu.dot_dimension_numbers<[1], [0], [0], [1], [0, 0, 1, 1], [], []>} : vector<2x16xbf16>, vector<16x128xbf16>, vector<2x128xf32> -> vector<2x128xf32>
    %6 = arith.addf %0, %5 : vector<2x128xf32>
    %c1 = arith.constant 1 : index
    %c0_5 = arith.constant 0 : index
    %c0_6 = arith.constant 0 : index
    %7 = vector.load %arg0[%c1, %c0_5, %c0_6] : memref<8x2x16xf32, #tpu.memory_space<vmem>>, vector<1x2x16xf32>
    %8 = vector.shape_cast %7 : vector<1x2x16xf32> to vector<2x16xf32>
    %9 = arith.truncf %8 : vector<2x16xf32> to vector<2x16xbf16>
    %c16 = arith.constant 16 : index
    %c0_7 = arith.constant 0 : index
    %10 = vector.load %arg1[%c16, %c0_7] : memref<144x128xbf16, #tpu.memory_space<vmem>>, vector<16x128xbf16>
    %cst_8 = arith.constant dense<0.000000e+00> : vector<2x128xf32>
    %11 = tpu.matmul %9, %10, %cst_8 {dimension_numbers = #tpu.dot_dimension_numbers<[1], [0], [0], [1], [0, 0, 1, 1], [], []>} : vector<2x16xbf16>, vector<16x128xbf16>, vector<2x128xf32> -> vector<2x128xf32>
    %12 = arith.addf %6, %11 : vector<2x128xf32>
    %c2 = arith.constant 2 : index
    %c0_9 = arith.constant 0 : index
    %c0_10 = arith.constant 0 : index
    %13 = vector.load %arg0[%c2, %c0_9, %c0_10] : memref<8x2x16xf32, #tpu.memory_space<vmem>>, vector<1x2x16xf32>
    %14 = vector.shape_cast %13 : vector<1x2x16xf32> to vector<2x16xf32>
    %15 = arith.truncf %14 : vector<2x16xf32> to vector<2x16xbf16>
    %c32 = arith.constant 32 : index
    %c0_11 = arith.constant 0 : index
    %16 = vector.load %arg1[%c32, %c0_11] : memref<144x128xbf16, #tpu.memory_space<vmem>>, vector<16x128xbf16>
    %cst_12 = arith.constant dense<0.000000e+00> : vector<2x128xf32>
    %17 = tpu.matmul %15, %16, %cst_12 {dimension_numbers = #tpu.dot_dimension_numbers<[1], [0], [0], [1], [0, 0, 1, 1], [], []>} : vector<2x16xbf16>, vector<16x128xbf16>, vector<2x128xf32> -> vector<2x128xf32>
    %18 = arith.addf %12, %17 : vector<2x128xf32>
    %c3 = arith.constant 3 : index
    %c0_13 = arith.constant 0 : index
    %c0_14 = arith.constant 0 : index
    %19 = vector.load %arg0[%c3, %c0_13, %c0_14] : memref<8x2x16xf32, #tpu.memory_space<vmem>>, vector<1x2x16xf32>
    %20 = vector.shape_cast %19 : vector<1x2x16xf32> to vector<2x16xf32>
    %21 = arith.truncf %20 : vector<2x16xf32> to vector<2x16xbf16>
    %c48 = arith.constant 48 : index
    %c0_15 = arith.constant 0 : index
    %22 = vector.load %arg1[%c48, %c0_15] : memref<144x128xbf16, #tpu.memory_space<vmem>>, vector<16x128xbf16>
    %cst_16 = arith.constant dense<0.000000e+00> : vector<2x128xf32>
    %23 = tpu.matmul %21, %22, %cst_16 {dimension_numbers = #tpu.dot_dimension_numbers<[1], [0], [0], [1], [0, 0, 1, 1], [], []>} : vector<2x16xbf16>, vector<16x128xbf16>, vector<2x128xf32> -> vector<2x128xf32>
    %24 = arith.addf %18, %23 : vector<2x128xf32>
    %c4 = arith.constant 4 : index
    %c0_17 = arith.constant 0 : index
    %c0_18 = arith.constant 0 : index
    %25 = vector.load %arg0[%c4, %c0_17, %c0_18] : memref<8x2x16xf32, #tpu.memory_space<vmem>>, vector<1x2x16xf32>
    %26 = vector.shape_cast %25 : vector<1x2x16xf32> to vector<2x16xf32>
    %27 = arith.truncf %26 : vector<2x16xf32> to vector<2x16xbf16>
    %c64 = arith.constant 64 : index
    %c0_19 = arith.constant 0 : index
    %28 = vector.load %arg1[%c64, %c0_19] : memref<144x128xbf16, #tpu.memory_space<vmem>>, vector<16x128xbf16>
    %cst_20 = arith.constant dense<0.000000e+00> : vector<2x128xf32>
    %29 = tpu.matmul %27, %28, %cst_20 {dimension_numbers = #tpu.dot_dimension_numbers<[1], [0], [0], [1], [0, 0, 1, 1], [], []>} : vector<2x16xbf16>, vector<16x128xbf16>, vector<2x128xf32> -> vector<2x128xf32>
    %30 = arith.addf %24, %29 : vector<2x128xf32>
    %c5 = arith.constant 5 : index
    %c0_21 = arith.constant 0 : index
    %c0_22 = arith.constant 0 : index
    %31 = vector.load %arg0[%c5, %c0_21, %c0_22] : memref<8x2x16xf32, #tpu.memory_space<vmem>>, vector<1x2x16xf32>
    %32 = vector.shape_cast %31 : vector<1x2x16xf32> to vector<2x16xf32>
    %33 = arith.truncf %32 : vector<2x16xf32> to vector<2x16xbf16>
    %c80 = arith.constant 80 : index
    %c0_23 = arith.constant 0 : index
    %34 = vector.load %arg1[%c80, %c0_23] : memref<144x128xbf16, #tpu.memory_space<vmem>>, vector<16x128xbf16>
    %cst_24 = arith.constant dense<0.000000e+00> : vector<2x128xf32>
    %35 = tpu.matmul %33, %34, %cst_24 {dimension_numbers = #tpu.dot_dimension_numbers<[1], [0], [0], [1], [0, 0, 1, 1], [], []>} : vector<2x16xbf16>, vector<16x128xbf16>, vector<2x128xf32> -> vector<2x128xf32>
    %36 = arith.addf %30, %35 : vector<2x128xf32>
    %c6 = arith.constant 6 : index
    %c0_25 = arith.constant 0 : index
    %c0_26 = arith.constant 0 : index
    %37 = vector.load %arg0[%c6, %c0_25, %c0_26] : memref<8x2x16xf32, #tpu.memory_space<vmem>>, vector<1x2x16xf32>
    %38 = vector.shape_cast %37 : vector<1x2x16xf32> to vector<2x16xf32>
    %39 = arith.truncf %38 : vector<2x16xf32> to vector<2x16xbf16>
    %c96 = arith.constant 96 : index
    %c0_27 = arith.constant 0 : index
    %40 = vector.load %arg1[%c96, %c0_27] : memref<144x128xbf16, #tpu.memory_space<vmem>>, vector<16x128xbf16>
    %cst_28 = arith.constant dense<0.000000e+00> : vector<2x128xf32>
    %41 = tpu.matmul %39, %40, %cst_28 {dimension_numbers = #tpu.dot_dimension_numbers<[1], [0], [0], [1], [0, 0, 1, 1], [], []>} : vector<2x16xbf16>, vector<16x128xbf16>, vector<2x128xf32> -> vector<2x128xf32>
    %42 = arith.addf %36, %41 : vector<2x128xf32>
    %c7 = arith.constant 7 : index
    %c0_29 = arith.constant 0 : index
    %c0_30 = arith.constant 0 : index
    %43 = vector.load %arg0[%c7, %c0_29, %c0_30] : memref<8x2x16xf32, #tpu.memory_space<vmem>>, vector<1x2x16xf32>
    %44 = vector.shape_cast %43 : vector<1x2x16xf32> to vector<2x16xf32>
    %45 = arith.truncf %44 : vector<2x16xf32> to vector<2x16xbf16>
    %c112 = arith.constant 112 : index
    %c0_31 = arith.constant 0 : index
    %46 = vector.load %arg1[%c112, %c0_31] : memref<144x128xbf16, #tpu.memory_space<vmem>>, vector<16x128xbf16>
    %cst_32 = arith.constant dense<0.000000e+00> : vector<2x128xf32>
    %47 = tpu.matmul %45, %46, %cst_32 {dimension_numbers = #tpu.dot_dimension_numbers<[1], [0], [0], [1], [0, 0, 1, 1], [], []>} : vector<2x16xbf16>, vector<16x128xbf16>, vector<2x128xf32> -> vector<2x128xf32>
    %48 = arith.addf %42, %47 : vector<2x128xf32>
    %c128 = arith.constant 128 : index
    %c0_33 = arith.constant 0 : index
    %49 = vector.load %arg1[%c128, %c0_33] : memref<144x128xbf16, #tpu.memory_space<vmem>>, vector<1x128xbf16>
    %50 = arith.extf %49 : vector<1x128xbf16> to vector<1x128xf32>
    %51 = vector.broadcast %50 : vector<1x128xf32> to vector<2x128xf32>
    %52 = arith.addf %48, %51 : vector<2x128xf32>
    %c0_34 = arith.constant 0 : index
    %c0_35 = arith.constant 0 : index
    %53 = vector.load %arg2[%c0_34, %c0_35] : memref<2x128xf32, #tpu.memory_space<vmem>>, vector<2x128xf32>
    tpu.vector_store %arg2[%c0_34, %c0_35], %52 {strides = array<i32>} : memref<2x128xf32, #tpu.memory_space<vmem>>, vector<2x128xf32>,
    return
  }
}

</mosaic_0001>

<llo_original>
// kernel: _lambda_.1
$region0: #{_lambda_.1}
  #allocation0 [shape = 'u32[]', space=smem, size = 0x4, offset = 0x4, fixed_abs, tag = 'smem constant byte address 0x4 - core index']
  #allocation1 [shape = 'u32[144,128]{1,0:T(1,128)}', space=vmem, size = 0x12000, scoped, tag = 'internal scratch']
  %s0 = inlined_call_operand.hbm [shape: f32[8,2,16], index: 0, kind: input, shape index: {}]
  %s1 = inlined_call_operand.hbm [shape: bf16[144,128], index: 1, kind: input, shape index: {}]
  %s2 = inlined_call_operand.hbm [shape: f32[2,128], index: 2, kind: output, shape index: {}]
  %s3 = sld [smem:[#allocation0]]
  $region26: #{_lambda_.1} parent=0
    _
  %s5 = ssub.s32 1, %s3
  %s6 = scalar_select 0, %s5, %s3
  $region1: #{_lambda_.1} parent=0
    #allocation2 [shape = 'u8[8192]{0}', space=vmem, size = 0x2000, scoped, tag = 'input window, operand 0, single buffered']
    #allocation3 [shape = 's32[1]{0}', space=sflag, size = 0x4, scoped, tag = 'scoped memory for _lambda_.1']
    #allocation4 [shape = 's32[1]{0}', space=sflag, size = 0x4, scoped, tag = 'scoped memory for _lambda_.1']
    #allocation5 [shape = 'u8[36864]{0}', space=vmem, size = 0x9000, scoped, tag = 'input window, operand 1, single buffered']
    #allocation6 [shape = 's32[1]{0}', space=sflag, size = 0x4, scoped, tag = 'scoped memory for _lambda_.1']
    #allocation7 [shape = 'u8[1024]{0}', space=vmem, size = 0x400, scoped, tag = 'output window, operand 0, single buffered']
    %7 = vsyncpa [#allocation3], 0
    %8 = vsyncpa [#allocation6], 0
    %9 = vsyncpa [#allocation4], 0
    // Predicated region
    $region2: #{_lambda_.1} parent=1 // pred_check
      _
    $region3: #{_lambda_.1} parent=1 // pred_check_branch
      %11 = sbr.rel (0) target = $region5
    $region4: #{_lambda_.1} parent=1 // pred_region
      %s13 = ssub.s32 256, 256
      %14 = vsyncadd [#allocation3], %s13
      %s15 = sshll.u32 [#allocation2], 4
      %s16 = int_to_ptr.vmem [resolvable:$true] %s15
      %21 = dma.hbm_to_vmem [thread:$0]  %s0, 256, %s16, [#allocation3], 32, 32, 2
    $region5: #{_lambda_.1} parent=1 // pred_fallthru
      _
    // Predicated region
    $region6: #{_lambda_.1} parent=1 // pred_check
      _
    $region7: #{_lambda_.1} parent=1 // pred_check_branch
      %23 = sbr.rel (0) target = $region9
    $region8: #{_lambda_.1} parent=1 // pred_region
      %s25 = ssub.s32 1152, 1152
      %26 = vsyncadd [#allocation6], %s25
      %s27 = sshll.u32 [#allocation5], 4
      %s28 = int_to_ptr.vmem [resolvable:$true] %s27
      %33 = dma.hbm_to_vmem [thread:$0]  %s1, 1152, %s28, [#allocation6], 64, 64, 4
    $region9: #{_lambda_.1} parent=1 // pred_fallthru
      _
    // Predicated region
    $region10: #{_lambda_.1} parent=1 // pred_check
      _
    $region11: #{_lambda_.1} parent=1 // pred_check_branch
      %35 = sbr.rel (0) target = $region13
    $region12: #{_lambda_.1} parent=1 // pred_region
      %36 = dma.done [#allocation3], 256
    $region13: #{_lambda_.1} parent=1 // pred_fallthru
      _
    // Predicated region
    $region14: #{_lambda_.1} parent=1 // pred_check
      _
    $region15: #{_lambda_.1} parent=1 // pred_check_branch
      %38 = sbr.rel (0) target = $region17
    $region16: #{_lambda_.1} parent=1 // pred_region
      %39 = dma.done [#allocation6], 1152
    $region17: #{_lambda_.1} parent=1 // pred_fallthru
      _
    %v41 = vld [vmem:[#allocation2] sm:$0x3]
    %v42 = vpack.c.bf16 %v41, %v41
    %v43 = vld [vmem:[#allocation5] sm:$0xf]
    %v44 = vld [vmem:[#allocation5 + $0x4] sm:$0xf]
    %s45 = scalar_lea.vmem [#allocation2], 2
    %v46 = vld [vmem:[%s45] sm:$0x3]
    %v47 = vpack.c.bf16 %v46, %v46
    %v48 = vld [vmem:[#allocation5 + $0x8] sm:$0xf]
    %v49 = vld [vmem:[#allocation5 + $0xc] sm:$0xf]
    %v52 = vunpack.c.l.b16 %v48
    %v53 = vunpack.c.l.b16 %v49
    %v54 = vpack.c.b16 %v53, %v52
    %vm56 = vcmask 130048
    %v58 = vsel %vm56, %v47, 0
    %60 = vmatprep.subr.bf16.mxu0 0
    %61 = vmatpush1.bf16.msra.mxu0 %v54
    %62 = vmatprep.subr.bf16.mxu0 0
    %63 = vmatpush1.bf16.msra.mxu0 0
    %64 = vmatprep.subr.bf16.mxu0 0
    %65 = vmatpush1.bf16.msra.mxu0 0
    %66 = vmatprep.subr.bf16.mxu0 0
    %67 = vmatpush1.bf16.msra.mxu0 0
    %68 = vmatprep.subr.bf16.mxu0 0
    %69 = vmatpush1.bf16.msra.mxu0 0
    %70 = vmatprep.subr.bf16.mxu0 0
    %71 = vmatpush1.bf16.msra.mxu0 0
    %72 = vmatprep.subr.bf16.mxu0 0
    %73 = vmatpush1.bf16.msra.mxu0 0
    %74 = vmatprep.subr.bf16.mxu0 0
    %75 = vmatpush1.bf16.msra.mxu0 0
    %76 = vmatprep.subr.bf16.mxu0 0
    %77 = vmatpush1.bf16.msra.mxu0 0
    %78 = vmatprep.subr.bf16.mxu0 0
    %79 = vmatpush1.bf16.msra.mxu0 0
    %80 = vmatprep.subr.bf16.mxu0 0
    %81 = vmatpush1.bf16.msra.mxu0 0
    %82 = vmatprep.subr.bf16.mxu0 0
    %83 = vmatpush1.bf16.msra.mxu0 0
    %84 = vmatprep.subr.bf16.mxu0 0
    %85 = vmatpush1.bf16.msra.mxu0 0
    %86 = vmatprep.subr.bf16.mxu0 0
    %87 = vmatpush1.bf16.msra.mxu0 0
    %88 = vmatprep.subr.bf16.mxu0 0
    %89 = vmatpush1.bf16.msra.mxu0 0
    %90 = vmatprep.subr.bf16.mxu0 0
    %91 = vmatpush1.bf16.msra.mxu0 0
    %92 = vmatprep.mubr.bf16.mxu0 0
    %93 = vmatmul.mubr.bf16.gmra.mrb[0].mxu0 %v58
    %v94 = vpop.f32.mrb[0].mxu0
    %v95 = vadd.f32 0.0, %v94
    %v96 = vpop.f32.mrb[0].mxu0
    %v97 = vpop.f32.mrb[0].mxu0
    %v98 = vpop.f32.mrb[0].mxu0
    %99 = vdwg.mxu0
    %v102 = vunpack.c.l.b16 %v43
    %v103 = vunpack.c.l.b16 %v44
    %v104 = vpack.c.b16 %v103, %v102
    %v107 = vsel %vm56, %v42, 0
    %109 = vmatprep.subr.bf16.mxu0 0
    %110 = vmatpush1.bf16.msra.mxu0 %v104
    %111 = vmatprep.subr.bf16.mxu0 0
    %112 = vmatpush1.bf16.msra.mxu0 0
    %113 = vmatprep.subr.bf16.mxu0 0
    %114 = vmatpush1.bf16.msra.mxu0 0
    %115 = vmatprep.subr.bf16.mxu0 0
    %116 = vmatpush1.bf16.msra.mxu0 0
    %117 = vmatprep.subr.bf16.mxu0 0
    %118 = vmatpush1.bf16.msra.mxu0 0
    %119 = vmatprep.subr.bf16.mxu0 0
    %120 = vmatpush1.bf16.msra.mxu0 0
    %121 = vmatprep.subr.bf16.mxu0 0
    %122 = vmatpush1.bf16.msra.mxu0 0
    %123 = vmatprep.subr.bf16.mxu0 0
    %124 = vmatpush1.bf16.msra.mxu0 0
    %125 = vmatprep.subr.bf16.mxu0 0
    %126 = vmatpush1.bf16.msra.mxu0 0
    %127 = vmatprep.subr.bf16.mxu0 0
    %128 = vmatpush1.bf16.msra.mxu0 0
    %129 = vmatprep.subr.bf16.mxu0 0
    %130 = vmatpush1.bf16.msra.mxu0 0
    %131 = vmatprep.subr.bf16.mxu0 0
    %132 = vmatpush1.bf16.msra.mxu0 0
    %133 = vmatprep.subr.bf16.mxu0 0
    %134 = vmatpush1.bf16.msra.mxu0 0
    %135 = vmatprep.subr.bf16.mxu0 0
    %136 = vmatpush1.bf16.msra.mxu0 0
    %137 = vmatprep.subr.bf16.mxu0 0
    %138 = vmatpush1.bf16.msra.mxu0 0
    %139 = vmatprep.subr.bf16.mxu0 0
    %140 = vmatpush1.bf16.msra.mxu0 0
    %141 = vmatprep.mubr.bf16.mxu0 0
    %142 = vmatmul.mubr.bf16.gmra.mrb[0].mxu0 %v107
    %v143 = vpop.f32.mrb[0].mxu0
    %v144 = vadd.f32 %v95, %v143
    %v145 = vpop.f32.mrb[0].mxu0
    %v146 = vpop.f32.mrb[0].mxu0
    %v147 = vpop.f32.mrb[0].mxu0
    %148 = vdwg.mxu0
    %s149 = scalar_lea.vmem [#allocation2], 4
    %v150 = vld [vmem:[%s149] sm:$0x3]
    %v151 = vpack.c.bf16 %v150, %v150
    %v152 = vld [vmem:[#allocation5 + $0x10] sm:$0xf]
    %v153 = vld [vmem:[#allocation5 + $0x14] sm:$0xf]
    %v156 = vunpack.c.l.b16 %v152
    %v157 = vunpack.c.l.b16 %v153
    %v158 = vpack.c.b16 %v157, %v156
    %v161 = vsel %vm56, %v151, 0
    %163 = vmatprep.subr.bf16.mxu0 0
    %164 = vmatpush1.bf16.msra.mxu0 %v158
    %165 = vmatprep.subr.bf16.mxu0 0
    %166 = vmatpush1.bf16.msra.mxu0 0
    %167 = vmatprep.subr.bf16.mxu0 0
    %168 = vmatpush1.bf16.msra.mxu0 0
    %169 = vmatprep.subr.bf16.mxu0 0
    %170 = vmatpush1.bf16.msra.mxu0 0
    %171 = vmatprep.subr.bf16.mxu0 0
    %172 = vmatpush1.bf16.msra.mxu0 0
    %173 = vmatprep.subr.bf16.mxu0 0
    %174 = vmatpush1.bf16.msra.mxu0 0
    %175 = vmatprep.subr.bf16.mxu0 0
    %176 = vmatpush1.bf16.msra.mxu0 0
    %177 = vmatprep.subr.bf16.mxu0 0
    %178 = vmatpush1.bf16.msra.mxu0 0
    %179 = vmatprep.subr.bf16.mxu0 0
    %180 = vmatpush1.bf16.msra.mxu0 0
    %181 = vmatprep.subr.bf16.mxu0 0
    %182 = vmatpush1.bf16.msra.mxu0 0
    %183 = vmatprep.subr.bf16.mxu0 0
    %184 = vmatpush1.bf16.msra.mxu0 0
    %185 = vmatprep.subr.bf16.mxu0 0
    %186 = vmatpush1.bf16.msra.mxu0 0
    %187 = vmatprep.subr.bf16.mxu0 0
    %188 = vmatpush1.bf16.msra.mxu0 0
    %189 = vmatprep.subr.bf16.mxu0 0
    %190 = vmatpush1.bf16.msra.mxu0 0
    %191 = vmatprep.subr.bf16.mxu0 0
    %192 = vmatpush1.bf16.msra.mxu0 0
    %193 = vmatprep.subr.bf16.mxu0 0
    %194 = vmatpush1.bf16.msra.mxu0 0
    %195 = vmatprep.mubr.bf16.mxu0 0
    %196 = vmatmul.mubr.bf16.gmra.mrb[0].mxu0 %v161
    %v197 = vpop.f32.mrb[0].mxu0
    %v198 = vadd.f32 0.0, %v197
    %v199 = vpop.f32.mrb[0].mxu0
    %v200 = vpop.f32.mrb[0].mxu0
    %v201 = vpop.f32.mrb[0].mxu0
    %202 = vdwg.mxu0
    %v203 = vadd.f32 %v144, %v198
    %s204 = scalar_lea.vmem [#allocation2], 6
    %v205 = vld [vmem:[%s204] sm:$0x3]
    %v206 = vpack.c.bf16 %v205, %v205
    %v207 = vld [vmem:[#allocation5 + $0x18] sm:$0xf]
    %v208 = vld [vmem:[#allocation5 + $0x1c] sm:$0xf]
    %v211 = vunpack.c.l.b16 %v207
    %v212 = vunpack.c.l.b16 %v208
    %v213 = vpack.c.b16 %v212, %v211
    %v216 = vsel %vm56, %v206, 0
    %218 = vmatprep.subr.bf16.mxu0 0
    %219 = vmatpush1.bf16.msra.mxu0 %v213
    %220 = vmatprep.subr.bf16.mxu0 0
    %221 = vmatpush1.bf16.msra.mxu0 0
    %222 = vmatprep.subr.bf16.mxu0 0
    %223 = vmatpush1.bf16.msra.mxu0 0
    %224 = vmatprep.subr.bf16.mxu0 0
    %225 = vmatpush1.bf16.msra.mxu0 0
    %226 = vmatprep.subr.bf16.mxu0 0
    %227 = vmatpush1.bf16.msra.mxu0 0
    %228 = vmatprep.subr.bf16.mxu0 0
    %229 = vmatpush1.bf16.msra.mxu0 0
    %230 = vmatprep.subr.bf16.mxu0 0
    %231 = vmatpush1.bf16.msra.mxu0 0
    %232 = vmatprep.subr.bf16.mxu0 0
    %233 = vmatpush1.bf16.msra.mxu0 0
    %234 = vmatprep.subr.bf16.mxu0 0
    %235 = vmatpush1.bf16.msra.mxu0 0
    %236 = vmatprep.subr.bf16.mxu0 0
    %237 = vmatpush1.bf16.msra.mxu0 0
    %238 = vmatprep.subr.bf16.mxu0 0
    %239 = vmatpush1.bf16.msra.mxu0 0
    %240 = vmatprep.subr.bf16.mxu0 0
    %241 = vmatpush1.bf16.msra.mxu0 0
    %242 = vmatprep.subr.bf16.mxu0 0
    %243 = vmatpush1.bf16.msra.mxu0 0
    %244 = vmatprep.subr.bf16.mxu0 0
    %245 = vmatpush1.bf16.msra.mxu0 0
    %246 = vmatprep.subr.bf16.mxu0 0
    %247 = vmatpush1.bf16.msra.mxu0 0
    %248 = vmatprep.subr.bf16.mxu0 0
    %249 = vmatpush1.bf16.msra.mxu0 0
    %250 = vmatprep.mubr.bf16.mxu0 0
    %251 = vmatmul.mubr.bf16.gmra.mrb[0].mxu0 %v216
    %v252 = vpop.f32.mrb[0].mxu0
    %v253 = vadd.f32 0.0, %v252
    %v254 = vpop.f32.mrb[0].mxu0
    %v255 = vpop.f32.mrb[0].mxu0
    %v256 = vpop.f32.mrb[0].mxu0
    %257 = vdwg.mxu0
    %v258 = vadd.f32 %v203, %v253
    %s259 = scalar_lea.vmem [#allocation2], 8
    %v260 = vld [vmem:[%s259] sm:$0x3]
    %v261 = vpack.c.bf16 %v260, %v260
    %v262 = vld [vmem:[#allocation5 + $0x20] sm:$0xf]
    %v263 = vld [vmem:[#allocation5 + $0x24] sm:$0xf]
    %v266 = vunpack.c.l.b16 %v262
    %v267 = vunpack.c.l.b16 %v263
    %v268 = vpack.c.b16 %v267, %v266
    %v271 = vsel %vm56, %v261, 0
    %273 = vmatprep.subr.bf16.mxu0 0
    %274 = vmatpush1.bf16.msra.mxu0 %v268
    %275 = vmatprep.subr.bf16.mxu0 0
    %276 = vmatpush1.bf16.msra.mxu0 0
    %277 = vmatprep.subr.bf16.mxu0 0
    %278 = vmatpush1.bf16.msra.mxu0 0
    %279 = vmatprep.subr.bf16.mxu0 0
    %280 = vmatpush1.bf16.msra.mxu0 0
    %281 = vmatprep.subr.bf16.mxu0 0
    %282 = vmatpush1.bf16.msra.mxu0 0
    %283 = vmatprep.subr.bf16.mxu0 0
    %284 = vmatpush1.bf16.msra.mxu0 0
    %285 = vmatprep.subr.bf16.mxu0 0
    %286 = vmatpush1.bf16.msra.mxu0 0
    %287 = vmatprep.subr.bf16.mxu0 0
    %288 = vmatpush1.bf16.msra.mxu0 0
    %289 = vmatprep.subr.bf16.mxu0 0
    %290 = vmatpush1.bf16.msra.mxu0 0
    %291 = vmatprep.subr.bf16.mxu0 0
    %292 = vmatpush1.bf16.msra.mxu0 0
    %293 = vmatprep.subr.bf16.mxu0 0
    %294 = vmatpush1.bf16.msra.mxu0 0
    %295 = vmatprep.subr.bf16.mxu0 0
    %296 = vmatpush1.bf16.msra.mxu0 0
    %297 = vmatprep.subr.bf16.mxu0 0
    %298 = vmatpush1.bf16.msra.mxu0 0
    %299 = vmatprep.subr.bf16.mxu0 0
    %300 = vmatpush1.bf16.msra.mxu0 0
    %301 = vmatprep.subr.bf16.mxu0 0
    %302 = vmatpush1.bf16.msra.mxu0 0
    %303 = vmatprep.subr.bf16.mxu0 0
    %304 = vmatpush1.bf16.msra.mxu0 0
    %305 = vmatprep.mubr.bf16.mxu0 0
    %306 = vmatmul.mubr.bf16.gmra.mrb[0].mxu0 %v271
    %v307 = vpop.f32.mrb[0].mxu0
    %v308 = vadd.f32 0.0, %v307
    %v309 = vpop.f32.mrb[0].mxu0
    %v310 = vpop.f32.mrb[0].mxu0
    %v311 = vpop.f32.mrb[0].mxu0
    %312 = vdwg.mxu0
    %v313 = vadd.f32 %v258, %v308
    %s314 = scalar_lea.vmem [#allocation2], 10
    %v315 = vld [vmem:[%s314] sm:$0x3]
    %v316 = vpack.c.bf16 %v315, %v315
    %v317 = vld [vmem:[#allocation5 + $0x28] sm:$0xf]
    %v318 = vld [vmem:[#allocation5 + $0x2c] sm:$0xf]
    %v321 = vunpack.c.l.b16 %v317
    %v322 = vunpack.c.l.b16 %v318
    %v323 = vpack.c.b16 %v322, %v321
    %v326 = vsel %vm56, %v316, 0
    %328 = vmatprep.subr.bf16.mxu0 0
    %329 = vmatpush1.bf16.msra.mxu0 %v323
    %330 = vmatprep.subr.bf16.mxu0 0
    %331 = vmatpush1.bf16.msra.mxu0 0
    %332 = vmatprep.subr.bf16.mxu0 0
    %333 = vmatpush1.bf16.msra.mxu0 0
    %334 = vmatprep.subr.bf16.mxu0 0
    %335 = vmatpush1.bf16.msra.mxu0 0
    %336 = vmatprep.subr.bf16.mxu0 0
    %337 = vmatpush1.bf16.msra.mxu0 0
    %338 = vmatprep.subr.bf16.mxu0 0
    %339 = vmatpush1.bf16.msra.mxu0 0
    %340 = vmatprep.subr.bf16.mxu0 0
    %341 = vmatpush1.bf16.msra.mxu0 0
    %342 = vmatprep.subr.bf16.mxu0 0
    %343 = vmatpush1.bf16.msra.mxu0 0
    %344 = vmatprep.subr.bf16.mxu0 0
    %345 = vmatpush1.bf16.msra.mxu0 0
    %346 = vmatprep.subr.bf16.mxu0 0
    %347 = vmatpush1.bf16.msra.mxu0 0
    %348 = vmatprep.subr.bf16.mxu0 0
    %349 = vmatpush1.bf16.msra.mxu0 0
    %350 = vmatprep.subr.bf16.mxu0 0
    %351 = vmatpush1.bf16.msra.mxu0 0
    %352 = vmatprep.subr.bf16.mxu0 0
    %353 = vmatpush1.bf16.msra.mxu0 0
    %354 = vmatprep.subr.bf16.mxu0 0
    %355 = vmatpush1.bf16.msra.mxu0 0
    %356 = vmatprep.subr.bf16.mxu0 0
    %357 = vmatpush1.bf16.msra.mxu0 0
    %358 = vmatprep.subr.bf16.mxu0 0
    %359 = vmatpush1.bf16.msra.mxu0 0
    %360 = vmatprep.mubr.bf16.mxu0 0
    %361 = vmatmul.mubr.bf16.gmra.mrb[0].mxu0 %v326
    %v362 = vpop.f32.mrb[0].mxu0
    %v363 = vadd.f32 0.0, %v362
    %v364 = vpop.f32.mrb[0].mxu0
    %v365 = vpop.f32.mrb[0].mxu0
    %v366 = vpop.f32.mrb[0].mxu0
    %367 = vdwg.mxu0
    %v368 = vadd.f32 %v313, %v363
    %s369 = scalar_lea.vmem [#allocation2], 12
    %v370 = vld [vmem:[%s369] sm:$0x3]
    %v371 = vpack.c.bf16 %v370, %v370
    %v372 = vld [vmem:[#allocation5 + $0x30] sm:$0xf]
    %v373 = vld [vmem:[#allocation5 + $0x34] sm:$0xf]
    %v376 = vunpack.c.l.b16 %v372
    %v377 = vunpack.c.l.b16 %v373
    %v378 = vpack.c.b16 %v377, %v376
    %v381 = vsel %vm56, %v371, 0
    %383 = vmatprep.subr.bf16.mxu0 0
    %384 = vmatpush1.bf16.msra.mxu0 %v378
    %385 = vmatprep.subr.bf16.mxu0 0
    %386 = vmatpush1.bf16.msra.mxu0 0
    %387 = vmatprep.subr.bf16.mxu0 0
    %388 = vmatpush1.bf16.msra.mxu0 0
    %389 = vmatprep.subr.bf16.mxu0 0
    %390 = vmatpush1.bf16.msra.mxu0 0
    %391 = vmatprep.subr.bf16.mxu0 0
    %392 = vmatpush1.bf16.msra.mxu0 0
    %393 = vmatprep.subr.bf16.mxu0 0
    %394 = vmatpush1.bf16.msra.mxu0 0
    %395 = vmatprep.subr.bf16.mxu0 0
    %396 = vmatpush1.bf16.msra.mxu0 0
    %397 = vmatprep.subr.bf16.mxu0 0
    %398 = vmatpush1.bf16.msra.mxu0 0
    %399 = vmatprep.subr.bf16.mxu0 0
    %400 = vmatpush1.bf16.msra.mxu0 0
    %401 = vmatprep.subr.bf16.mxu0 0
    %402 = vmatpush1.bf16.msra.mxu0 0
    %403 = vmatprep.subr.bf16.mxu0 0
    %404 = vmatpush1.bf16.msra.mxu0 0
    %405 = vmatprep.subr.bf16.mxu0 0
    %406 = vmatpush1.bf16.msra.mxu0 0
    %407 = vmatprep.subr.bf16.mxu0 0
    %408 = vmatpush1.bf16.msra.mxu0 0
    %409 = vmatprep.subr.bf16.mxu0 0
    %410 = vmatpush1.bf16.msra.mxu0 0
    %411 = vmatprep.subr.bf16.mxu0 0
    %412 = vmatpush1.bf16.msra.mxu0 0
    %413 = vmatprep.subr.bf16.mxu0 0
    %414 = vmatpush1.bf16.msra.mxu0 0
    %415 = vmatprep.mubr.bf16.mxu0 0
    %416 = vmatmul.mubr.bf16.gmra.mrb[0].mxu0 %v381
    %v417 = vpop.f32.mrb[0].mxu0
    %v418 = vadd.f32 0.0, %v417
    %v419 = vpop.f32.mrb[0].mxu0
    %v420 = vpop.f32.mrb[0].mxu0
    %v421 = vpop.f32.mrb[0].mxu0
    %422 = vdwg.mxu0
    %v423 = vadd.f32 %v368, %v418
    %s424 = scalar_lea.vmem [#allocation2], 14
    %v425 = vld [vmem:[%s424] sm:$0x3]
    %v426 = vpack.c.bf16 %v425, %v425
    %v427 = vld [vmem:[#allocation5 + $0x38] sm:$0xf]
    %v428 = vld [vmem:[#allocation5 + $0x3c] sm:$0xf]
    %v431 = vunpack.c.l.b16 %v427
    %v432 = vunpack.c.l.b16 %v428
    %v433 = vpack.c.b16 %v432, %v431
    %v436 = vsel %vm56, %v426, 0
    %438 = vmatprep.subr.bf16.mxu0 0
    %439 = vmatpush1.bf16.msra.mxu0 %v433
    %440 = vmatprep.subr.bf16.mxu0 0
    %441 = vmatpush1.bf16.msra.mxu0 0
    %442 = vmatprep.subr.bf16.mxu0 0
    %443 = vmatpush1.bf16.msra.mxu0 0
    %444 = vmatprep.subr.bf16.mxu0 0
    %445 = vmatpush1.bf16.msra.mxu0 0
    %446 = vmatprep.subr.bf16.mxu0 0
    %447 = vmatpush1.bf16.msra.mxu0 0
    %448 = vmatprep.subr.bf16.mxu0 0
    %449 = vmatpush1.bf16.msra.mxu0 0
    %450 = vmatprep.subr.bf16.mxu0 0
    %451 = vmatpush1.bf16.msra.mxu0 0
    %452 = vmatprep.subr.bf16.mxu0 0
    %453 = vmatpush1.bf16.msra.mxu0 0
    %454 = vmatprep.subr.bf16.mxu0 0
    %455 = vmatpush1.bf16.msra.mxu0 0
    %456 = vmatprep.subr.bf16.mxu0 0
    %457 = vmatpush1.bf16.msra.mxu0 0
    %458 = vmatprep.subr.bf16.mxu0 0
    %459 = vmatpush1.bf16.msra.mxu0 0
    %460 = vmatprep.subr.bf16.mxu0 0
    %461 = vmatpush1.bf16.msra.mxu0 0
    %462 = vmatprep.subr.bf16.mxu0 0
    %463 = vmatpush1.bf16.msra.mxu0 0
    %464 = vmatprep.subr.bf16.mxu0 0
    %465 = vmatpush1.bf16.msra.mxu0 0
    %466 = vmatprep.subr.bf16.mxu0 0
    %467 = vmatpush1.bf16.msra.mxu0 0
    %468 = vmatprep.subr.bf16.mxu0 0
    %469 = vmatpush1.bf16.msra.mxu0 0
    %470 = vmatprep.mubr.bf16.mxu0 0
    %471 = vmatmul.mubr.bf16.gmra.mrb[0].mxu0 %v436
    %v472 = vpop.f32.mrb[0].mxu0
    %v473 = vadd.f32 0.0, %v472
    %v474 = vpop.f32.mrb[0].mxu0
    %v475 = vpop.f32.mrb[0].mxu0
    %v476 = vpop.f32.mrb[0].mxu0
    %477 = vdwg.mxu0
    %v478 = vadd.f32 %v423, %v473
    %v479 = vld [vmem:[#allocation5 + $0x40] sm:$0x1]
    %v480 = vunpack.c.l.bf16 %v479
    %v481 = vlaneseq
    %v482 = vshrl.u32 %v481, 7
    %v483 = vsub.s32 0, %v482
    %v484 = vrot.slane %v480, %v483
    %v485 = vadd.f32 %v478, %v484
    %486 = vst [vmem:[#allocation7] sm:$0x3] %v485
    // Predicated region
    $region18: #{_lambda_.1} parent=1 // pred_check
      _
    $region19: #{_lambda_.1} parent=1 // pred_check_branch
      %488 = sbr.rel (0) target = $region21
    $region20: #{_lambda_.1} parent=1 // pred_region
      %s490 = ssub.s32 32, 32
      %491 = vsyncadd [#allocation4], %s490
      %s493 = sshll.u32 [#allocation7], 4
      %s494 = int_to_ptr.vmem [resolvable:$true] %s493
      %496 = dma.vmem_to_hbm [thread:$0]  %s494, 32, %s2, [#allocation4]
    $region21: #{_lambda_.1} parent=1 // pred_fallthru
      _
    // Predicated region
    $region22: #{_lambda_.1} parent=1 // pred_check
      _
    $region23: #{_lambda_.1} parent=1 // pred_check_branch
      %498 = sbr.rel (0) target = $region25
    $region24: #{_lambda_.1} parent=1 // pred_region
      %499 = dma.done [#allocation4], 32
    $region25: #{_lambda_.1} parent=1 // pred_fallthru
      _
    %500 = vsyncpa [#allocation3], 1
    %501 = vsyncpa [#allocation6], 1
    %502 = vsyncpa [#allocation4], 1

</llo_original>
